<compile_context>
chip_gen: v6e
topology: v6e:2x2x1
jax: 0.10.0
libtpu: 0.0.40
codegen_flags: <defaults>
</compile_context>

<pallas_src>
import jax
import jax.numpy as jnp
import numpy as np
from jax.experimental import pallas as pl
from jax.experimental.pallas import tpu as pltpu

_NEG = -1.0e30  # large finite negative; avoids -inf * 0 = NaN in the pooling


def _make_yisi_kernel(TP, TR, p_tiles, r_tiles, Sp, Sr):
    """Builds the YiSi kernel for one (batch b, pred-tile p, ref-tile r) step.

    pred_ref : (1, TP, D) bf16, pre-normalized
    reft_ref : (1, D, TR) bf16, pre-normalized, pre-transposed
    pidf_ref : (1, TP, 1) f32    ridf_ref : (1, 1, TR) f32
    maxp_ref : (TP, 1)              running max over ref tokens (per Sp tile)
    maxr_ref : (r_tiles, 1, TR)     running max over pred tokens (per Sr tile)
    nump/denp/numr/denr_ref : (1, 1) per-batch pooled-sum accumulators
    """
    need_p_mask = (p_tiles * TP) != Sp
    need_r_mask = (r_tiles * TR) != Sr
    p_valid_last = Sp - (p_tiles - 1) * TP   # valid rows in the last p tile
    r_valid_last = Sr - (r_tiles - 1) * TR   # valid cols in the last r tile

    def kernel(pred_ref, reft_ref, pidf_ref, ridf_ref,
               wp_pred_ref, wp_ref_ref,
               maxp_ref, maxr_ref, nump_ref, denp_ref, numr_ref, denr_ref):
        p = pl.program_id(1)
        r = pl.program_id(2)

        # ---- per-batch init of the pooled-sum accumulators ------------------
        @pl.when((p == 0) & (r == 0))
        def _():
            nump_ref[...] = jnp.zeros_like(nump_ref)
            denp_ref[...] = jnp.zeros_like(denp_ref)
            numr_ref[...] = jnp.zeros_like(numr_ref)
            denr_ref[...] = jnp.zeros_like(denr_ref)

        # ---- init running-max accumulators ----------------------------------
        @pl.when(r == 0)
        def _():
            maxp_ref[...] = jnp.full(maxp_ref.shape, _NEG, maxp_ref.dtype)

        @pl.when(p == 0)
        def _():
            maxr_ref[r] = jnp.full(maxr_ref.shape[1:], _NEG, maxr_ref.dtype)

        # ---- cosine-similarity tile on the MXU (inputs pre-normalized) ------
        sim = jnp.dot(pred_ref[0], reft_ref[0],
                      preferred_element_type=jnp.float32)        # (TP, TR) f32

        # ---- running row max over ref tokens (mask only on last r tile) -----
        def _update_row_max(s):
            maxp_ref[...] = jnp.maximum(
                maxp_ref[...], jnp.max(s, axis=1, keepdims=True))

        if need_r_mask:
            @pl.when(r == r_tiles - 1)
            def _():
                col = jax.lax.broadcasted_iota(jnp.int32, (TP, TR), 1)
                _update_row_max(jnp.where(col < r_valid_last, sim, _NEG))

            @pl.when(r != r_tiles - 1)
            def _():
                _update_row_max(sim)
        else:
            _update_row_max(sim)

        # ---- running col max over pred tokens (mask only on last p tile) ----
        def _update_col_max(s):
            maxr_ref[r] = jnp.maximum(
                maxr_ref[r], jnp.max(s, axis=0, keepdims=True))

        if need_p_mask:
            @pl.when(p == p_tiles - 1)
            def _():
                row = jax.lax.broadcasted_iota(jnp.int32, (TP, TR), 0)
                _update_col_max(jnp.where(row < p_valid_last, sim, _NEG))

            @pl.when(p != p_tiles - 1)
            def _():
                _update_col_max(sim)
        else:
            _update_col_max(sim)

        # ---- pred-side pooling: row max for this Sp tile complete at last r -
        @pl.when(r == r_tiles - 1)
        def _():
            idf_p = pidf_ref[0]                                   # (TP, 1)
            nump_ref[...] += jnp.sum(maxp_ref[...] * idf_p, axis=0, keepdims=True)
            denp_ref[...] += jnp.sum(idf_p, axis=0, keepdims=True)

        # ---- ref-side pooling: col max for this Sr tile complete at last p --
        @pl.when(p == p_tiles - 1)
        def _():
            idf_r = ridf_ref[0]                                   # (1, TR)
            numr_ref[...] += jnp.sum(maxr_ref[r] * idf_r, axis=1, keepdims=True)
            denr_ref[...] += jnp.sum(idf_r, axis=1, keepdims=True)

        # ---- finalize: write the (1,1) pooled outputs once per batch --------
        @pl.when((p == p_tiles - 1) & (r == r_tiles - 1))
        def _():
            wp_pred_ref[0] = nump_ref[...] / denp_ref[...]
            wp_ref_ref[0] = numr_ref[...] / denr_ref[...]

    return kernel


def _pad_axis(x, axis, new_size):
    if x.shape[axis] == new_size:
        return x
    widths = [(0, 0)] * x.ndim
    widths[axis] = (0, new_size - x.shape[axis])
    return jnp.pad(x, widths)


def yisi_pallas(pred_emb, ref_emb, pred_idf, ref_idf, *, tile_p=None, tile_r=None):
    """Pallas implementation of YiSiModel.forward (post-encoder)."""
    B, Sp, D = pred_emb.shape
    _, Sr, _ = ref_emb.shape
    f32, bf16 = jnp.float32, jnp.bfloat16

    # ---- tile selection -------------------------------------------------
    # TP: large tiles (default 512) so MXU passes are full on v6e/v7x and the
    # ~0.35us/step grid overhead is amortized; whole sequence if shorter.
    if tile_p is None:
        tile_p = 512
    # TR: keep the whole ref sequence VMEM-resident (r_tiles == 1) whenever
    # its bf16 tile is <= ~4 MiB, so ref embeddings are fetched once per
    # batch; otherwise tile at 512 (multiple of 128).
    if tile_r is None:
        tile_r = Sr if Sr * D * 2 <= 4 * 1024 * 1024 else 512
    TP = tile_p if Sp > tile_p else Sp
    TR = tile_r if Sr > tile_r else Sr
    Sp_pad = ((Sp + TP - 1) // TP) * TP
    Sr_pad = ((Sr + TR - 1) // TR) * TR
    p_tiles = Sp_pad // TP
    r_tiles = Sr_pad // TR

    # ---- pre-normalize (cosine) + bf16 cast in the wrapper ----------------
    pe = pred_emb.astype(f32)
    re = ref_emb.astype(f32)
    pe = pe * jax.lax.rsqrt(jnp.sum(pe * pe, axis=-1, keepdims=True) + 1e-12)
    re = re * jax.lax.rsqrt(jnp.sum(re * re, axis=-1, keepdims=True) + 1e-12)
    pe = _pad_axis(pe, 1, Sp_pad).astype(bf16)                       # (B,Sp_pad,D)
    ret = _pad_axis(jnp.swapaxes(re, 1, 2), 2, Sr_pad).astype(bf16)  # (B,D,Sr_pad)
    pidf = _pad_axis(pred_idf.astype(f32), 1, Sp_pad)[..., None]     # (B,Sp_pad,1)
    ridf = _pad_axis(ref_idf.astype(f32), 1, Sr_pad)[:, None, :]     # (B,1,Sr_pad)

    kernel = _make_yisi_kernel(TP, TR, p_tiles, r_tiles, Sp, Sr)

    grid_spec = pltpu.PrefetchScalarGridSpec(
        num_scalar_prefetch=0,
        grid=(B, p_tiles, r_tiles),
        in_specs=[
            pl.BlockSpec((1, TP, D), lambda b, p, r: (b, p, 0)),   # pred_emb (bf16)
            pl.BlockSpec((1, D, TR), lambda b, p, r: (b, 0, r)),   # ref_emb^T (bf16)
            pl.BlockSpec((1, TP, 1), lambda b, p, r: (b, p, 0)),   # pred_idf
            pl.BlockSpec((1, 1, TR), lambda b, p, r: (b, 0, r)),   # ref_idf
        ],
        out_specs=[
            pl.BlockSpec((1, 1, 1), lambda b, p, r: (b, 0, 0)),    # wp_pred
            pl.BlockSpec((1, 1, 1), lambda b, p, r: (b, 0, 0)),    # wp_ref
        ],
        scratch_shapes=[
            pltpu.VMEM((TP, 1), f32),            # running max over ref tokens
            pltpu.VMEM((r_tiles, 1, TR), f32),   # running max over pred tokens
            pltpu.VMEM((1, 1), f32),             # pred numerator
            pltpu.VMEM((1, 1), f32),             # pred denominator
            pltpu.VMEM((1, 1), f32),             # ref numerator
            pltpu.VMEM((1, 1), f32),             # ref denominator
        ],
    )

    wp_pred, wp_ref = pl.pallas_call(
        kernel,
        out_shape=(jax.ShapeDtypeStruct((B, 1, 1), f32),
                   jax.ShapeDtypeStruct((B, 1, 1), f32)),
        grid_spec=grid_spec,
        compiler_params=pltpu.CompilerParams(
            # batch is independent -> megacore-shardable; Sp and Sr carry
            # running-max / pooled-sum accumulators -> reduction ("arbitrary").
            dimension_semantics=("parallel", "arbitrary", "arbitrary")),
    )(pe, ret, pidf, ridf)

    return wp_pred.reshape(B, 1), wp_ref.reshape(B, 1)


def synthetic_token_embeddings(emb_table, input_ids, attention_mask):
    """Deterministic stand-in for get_token_embeddings (plain JAX glue)."""
    emb = jnp.take(emb_table, input_ids, axis=0)                  # (B, S, D)
    return emb + 0.1 * attention_mask[..., None].astype(jnp.float32)


def yisi_reference(pred_emb, ref_emb, pred_idf, ref_idf):
    """Pure-JAX f32 reference of the same math (for verification)."""
    n1 = jnp.linalg.norm(pred_emb, axis=2, keepdims=True)
    n2 = jnp.linalg.norm(ref_emb, axis=2, keepdims=True)
    sim = jnp.einsum('bpd,brd->bpr', pred_emb, ref_emb) / (n1 * jnp.swapaxes(n2, 1, 2))
    mp = sim.max(axis=2)
    mr = sim.max(axis=1)
    wp = (mp * pred_idf).sum(axis=1, keepdims=True) / pred_idf.sum(axis=1, keepdims=True)
    wr = (mr * ref_idf).sum(axis=1, keepdims=True) / ref_idf.sum(axis=1, keepdims=True)
    return wp, wr


def _run_case(B, Sp, Sr, D, vocab_size, tile_p=None, tile_r=None):
    key = jax.random.PRNGKey(0)
    k_emb, k_pred, k_ref = jax.random.split(key, 3)

    # Deterministic "encoder" parameters: an embedding table (vocab, D).
    emb_table = jax.random.normal(k_emb, (vocab_size, D), dtype=jnp.float32)

    # Deterministic idf_weights dict -> dense lookup table (default 1.0).
    idf_dict = {i: 1.0 + 0.05 * (i % 7) for i in range(0, vocab_size, 3)}
    idf_table_np = np.ones((vocab_size,), dtype=np.float32)
    for tok, w in idf_dict.items():
        idf_table_np[tok] = w
    idf_table = jnp.asarray(idf_table_np)

    pred_input_ids = jax.random.randint(k_pred, (B, Sp), 0, vocab_size, dtype=jnp.int32)
    ref_input_ids = jax.random.randint(k_ref, (B, Sr), 0, vocab_size, dtype=jnp.int32)
    pred_attention_mask = jnp.ones((B, Sp), dtype=jnp.int32)
    ref_attention_mask = jnp.ones((B, Sr), dtype=jnp.int32)

    # Glue: synthetic encoder + idf dict lookup (data-dependent gather).
    pred_emb = synthetic_token_embeddings(emb_table, pred_input_ids, pred_attention_mask)
    ref_emb = synthetic_token_embeddings(emb_table, ref_input_ids, ref_attention_mask)
    pred_idf = jnp.take(idf_table, pred_input_ids)                # (B, Sp)
    ref_idf = jnp.take(idf_table, ref_input_ids)                  # (B, Sr)

    wp_pred, wp_ref = yisi_pallas(pred_emb, ref_emb, pred_idf, ref_idf,
                                  tile_p=tile_p, tile_r=tile_r)
    jax.block_until_ready((wp_pred, wp_ref))

    wp_pred_r, wp_ref_r = yisi_reference(pred_emb, ref_emb, pred_idf, ref_idf)
    # bf16 MXU operands (f32 accumulate) -> loosened tolerance vs the f32 ref.
    np.testing.assert_allclose(np.asarray(wp_pred), np.asarray(wp_pred_r),
                               rtol=3e-2, atol=3e-2)
    np.testing.assert_allclose(np.asarray(wp_ref), np.asarray(wp_ref_r),
                               rtol=3e-2, atol=3e-2)


if __name__ == "__main__":
    # Small canonical case (single tile per sequence, default tiles).
    _run_case(B=2, Sp=8, Sr=16, D=32, vocab_size=64)
    # Explicit small tiles: exercises tiling + ragged padding on both axes
    # (boundary-only iota masking on the last p / last r tiles).
    _run_case(B=1, Sp=136, Sr=200, D=32, vocab_size=64, tile_p=64, tile_r=128)
    # Default big-tile path with pred tiling + pred-side boundary mask and the
    # whole ref sequence VMEM-resident (r_tiles == 1).
    _run_case(B=2, Sp=640, Sr=160, D=64, vocab_size=128)
    print("KERNEL_OK")
</pallas_src>

<mosaic_0001>
module attributes {stable_mosaic.version = 11 : i64} {
  func.func @kernel(%arg0: i32, %arg1: i32, %arg2: i32, %arg3: memref<1x8x32xbf16, #tpu.memory_space<vmem>>, %arg4: memref<1x32x16xbf16, #tpu.memory_space<vmem>>, %arg5: memref<1x8x1xf32, #tpu.memory_space<vmem>>, %arg6: memref<1x1x16xf32, #tpu.memory_space<vmem>>, %arg7: memref<1x1x1xf32, #tpu.memory_space<vmem>>, %arg8: memref<1x1x1xf32, #tpu.memory_space<vmem>>, %arg9: memref<8x1xf32, #tpu.memory_space<vmem>>, %arg10: memref<1x1x16xf32, #tpu.memory_space<vmem>>, %arg11: memref<1x1xf32, #tpu.memory_space<vmem>>, %arg12: memref<1x1xf32, #tpu.memory_space<vmem>>, %arg13: memref<1x1xf32, #tpu.memory_space<vmem>>, %arg14: memref<1x1xf32, #tpu.memory_space<vmem>>) attributes {dimension_semantics = [#tpu.dimension_semantics<parallel>, #tpu.dimension_semantics<arbitrary>, #tpu.dimension_semantics<arbitrary>], iteration_bounds = array<i64: 2, 1, 1>, scalar_prefetch = 0 : i64, scratch_operands = 6 : i64, tpu.core_type = #tpu.core_type<tc>, window_params = [{transform_indices = @transform_0, window_bounds = array<i64: 1, 8, 32>}, {transform_indices = @transform_1, window_bounds = array<i64: 1, 32, 16>}, {transform_indices = @transform_2, window_bounds = array<i64: 1, 8, 1>}, {transform_indices = @transform_3, window_bounds = array<i64: 1, 1, 16>}, {transform_indices = @transform_4, window_bounds = array<i64: 1, 1, 1>}, {transform_indices = @transform_5, window_bounds = array<i64: 1, 1, 1>}]} {
    %c0_i32 = arith.constant 0 : i32
    %0 = arith.cmpi eq, %arg1, %c0_i32 : i32
    %c0_i32_0 = arith.constant 0 : i32
    %1 = arith.cmpi eq, %arg2, %c0_i32_0 : i32
    %2 = arith.andi %0, %1 : i1
    %3 = arith.extui %2 : i1 to i32
    %c0_i32_1 = arith.constant 0 : i32
    %4 = arith.cmpi ne, %3, %c0_i32_1 : i32
    scf.if %4 {
      %cst_28 = arith.constant 0.000000e+00 : f32
      %42 = vector.broadcast %cst_28 : f32 to vector<1x1xf32>
      %c0_29 = arith.constant 0 : index
      %c0_30 = arith.constant 0 : index
      %43 = vector.load %arg11[%c0_29, %c0_30] : memref<1x1xf32, #tpu.memory_space<vmem>>, vector<1x1xf32>
      tpu.vector_store %arg11[%c0_29, %c0_30], %42 {strides = array<i32>} : memref<1x1xf32, #tpu.memory_space<vmem>>, vector<1x1xf32>,
      %cst_31 = arith.constant 0.000000e+00 : f32
      %44 = vector.broadcast %cst_31 : f32 to vector<1x1xf32>
      %c0_32 = arith.constant 0 : index
      %c0_33 = arith.constant 0 : index
      %45 = vector.load %arg12[%c0_32, %c0_33] : memref<1x1xf32, #tpu.memory_space<vmem>>, vector<1x1xf32>
      tpu.vector_store %arg12[%c0_32, %c0_33], %44 {strides = array<i32>} : memref<1x1xf32, #tpu.memory_space<vmem>>, vector<1x1xf32>,
      %cst_34 = arith.constant 0.000000e+00 : f32
      %46 = vector.broadcast %cst_34 : f32 to vector<1x1xf32>
      %c0_35 = arith.constant 0 : index
      %c0_36 = arith.constant 0 : index
      %47 = vector.load %arg13[%c0_35, %c0_36] : memref<1x1xf32, #tpu.memory_space<vmem>>, vector<1x1xf32>
      tpu.vector_store %arg13[%c0_35, %c0_36], %46 {strides = array<i32>} : memref<1x1xf32, #tpu.memory_space<vmem>>, vector<1x1xf32>,
      %cst_37 = arith.constant 0.000000e+00 : f32
      %48 = vector.broadcast %cst_37 : f32 to vector<1x1xf32>
      %c0_38 = arith.constant 0 : index
      %c0_39 = arith.constant 0 : index
      %49 = vector.load %arg14[%c0_38, %c0_39] : memref<1x1xf32, #tpu.memory_space<vmem>>, vector<1x1xf32>
      tpu.vector_store %arg14[%c0_38, %c0_39], %48 {strides = array<i32>} : memref<1x1xf32, #tpu.memory_space<vmem>>, vector<1x1xf32>,
    } else {
    }
    %c0_i32_2 = arith.constant 0 : i32
    %5 = arith.cmpi eq, %arg2, %c0_i32_2 : i32
    %6 = arith.extui %5 : i1 to i32
    %c0_i32_3 = arith.constant 0 : i32
    %7 = arith.cmpi ne, %6, %c0_i32_3 : i32
    scf.if %7 {
      %cst_28 = arith.constant -1.000000e+30 : f32
      %42 = vector.broadcast %cst_28 : f32 to vector<8x1xf32>
      %c0_29 = arith.constant 0 : index
      %c0_30 = arith.constant 0 : index
      %43 = vector.load %arg9[%c0_29, %c0_30] : memref<8x1xf32, #tpu.memory_space<vmem>>, vector<8x1xf32>
      tpu.vector_store %arg9[%c0_29, %c0_30], %42 {strides = array<i32>} : memref<8x1xf32, #tpu.memory_space<vmem>>, vector<8x1xf32>,
    } else {
    }
    %c0_i32_4 = arith.constant 0 : i32
    %8 = arith.cmpi eq, %arg1, %c0_i32_4 : i32
    %9 = arith.extui %8 : i1 to i32
    %c0_i32_5 = arith.constant 0 : i32
    %10 = arith.cmpi ne, %9, %c0_i32_5 : i32
    scf.if %10 {
      %cst_28 = arith.constant -1.000000e+30 : f32
      %42 = vector.broadcast %cst_28 : f32 to vector<1x16xf32>
      %43 = arith.index_cast %arg2 : i32 to index
      %c0_29 = arith.constant 0 : index
      %c0_30 = arith.constant 0 : index
      %44 = vector.load %arg10[%43, %c0_29, %c0_30] : memref<1x1x16xf32, #tpu.memory_space<vmem>>, vector<1x1x16xf32>
      %45 = vector.shape_cast %44 : vector<1x1x16xf32> to vector<1x16xf32>
      %46 = vector.shape_cast %42 : vector<1x16xf32> to vector<1x1x16xf32>
      tpu.vector_store %arg10[%43, %c0_29, %c0_30], %46 {strides = array<i32>} : memref<1x1x16xf32, #tpu.memory_space<vmem>>, vector<1x1x16xf32>,
    } else {
    }
    %c0 = arith.constant 0 : index
    %c0_6 = arith.constant 0 : index
    %c0_7 = arith.constant 0 : index
    %11 = vector.load %arg3[%c0, %c0_6, %c0_7] : memref<1x8x32xbf16, #tpu.memory_space<vmem>>, vector<1x8x32xbf16>
    %12 = vector.shape_cast %11 : vector<1x8x32xbf16> to vector<8x32xbf16>
    %c0_8 = arith.constant 0 : index
    %c0_9 = arith.constant 0 : index
    %c0_10 = arith.constant 0 : index
    %13 = vector.load %arg4[%c0_8, %c0_9, %c0_10] : memref<1x32x16xbf16, #tpu.memory_space<vmem>>, vector<1x32x16xbf16>
    %14 = vector.shape_cast %13 : vector<1x32x16xbf16> to vector<32x16xbf16>
    %cst = arith.constant dense<0.000000e+00> : vector<8x16xf32>
    %15 = tpu.matmul %12, %14, %cst {dimension_numbers = #tpu.dot_dimension_numbers<[1], [0], [0], [1], [0, 0, 1, 1], [], []>} : vector<8x32xbf16>, vector<32x16xbf16>, vector<8x16xf32> -> vector<8x16xf32>
    %c0_11 = arith.constant 0 : index
    %c0_12 = arith.constant 0 : index
    %16 = vector.load %arg9[%c0_11, %c0_12] : memref<8x1xf32, #tpu.memory_space<vmem>>, vector<8x1xf32>
    %cst_13 = arith.constant dense<0xFF800000> : vector<8xf32>
    %17 = vector.multi_reduction <maximumf>, %15, %cst_13 [1] : vector<8x16xf32> to vector<8xf32>
    %18 = vector.shape_cast %17 : vector<8xf32> to vector<8x1xf32>
    %19 = arith.maximumf %16, %18 : vector<8x1xf32>
    %c0_14 = arith.constant 0 : index
    %c0_15 = arith.constant 0 : index
    %20 = vector.load %arg9[%c0_14, %c0_15] : memref<8x1xf32, #tpu.memory_space<vmem>>, vector<8x1xf32>
    tpu.vector_store %arg9[%c0_14, %c0_15], %19 {strides = array<i32>} : memref<8x1xf32, #tpu.memory_space<vmem>>, vector<8x1xf32>,
    %21 = arith.index_cast %arg2 : i32 to index
    %c0_16 = arith.constant 0 : index
    %c0_17 = arith.constant 0 : index
    %22 = vector.load %arg10[%21, %c0_16, %c0_17] : memref<1x1x16xf32, #tpu.memory_space<vmem>>, vector<1x1x16xf32>
    %23 = vector.shape_cast %22 : vector<1x1x16xf32> to vector<1x16xf32>
    %cst_18 = arith.constant dense<0xFF800000> : vector<16xf32>
    %24 = vector.multi_reduction <maximumf>, %15, %cst_18 [0] : vector<8x16xf32> to vector<16xf32>
    %25 = vector.shape_cast %24 : vector<16xf32> to vector<1x16xf32>
    %26 = arith.maximumf %23, %25 : vector<1x16xf32>
    %27 = arith.index_cast %arg2 : i32 to index
    %c0_19 = arith.constant 0 : index
    %c0_20 = arith.constant 0 : index
    %28 = vector.load %arg10[%27, %c0_19, %c0_20] : memref<1x1x16xf32, #tpu.memory_space<vmem>>, vector<1x1x16xf32>
    %29 = vector.shape_cast %28 : vector<1x1x16xf32> to vector<1x16xf32>
    %30 = vector.shape_cast %26 : vector<1x16xf32> to vector<1x1x16xf32>
    tpu.vector_store %arg10[%27, %c0_19, %c0_20], %30 {strides = array<i32>} : memref<1x1x16xf32, #tpu.memory_space<vmem>>, vector<1x1x16xf32>,
    %c0_i32_21 = arith.constant 0 : i32
    %31 = arith.cmpi eq, %arg2, %c0_i32_21 : i32
    %32 = arith.extui %31 : i1 to i32
    %c0_i32_22 = arith.constant 0 : i32
    %33 = arith.cmpi ne, %32, %c0_i32_22 : i32
    scf.if %33 {
      %c0_28 = arith.constant 0 : index
      %c0_29 = arith.constant 0 : index
      %c0_30 = arith.constant 0 : index
      %42 = vector.load %arg5[%c0_28, %c0_29, %c0_30] : memref<1x8x1xf32, #tpu.memory_space<vmem>>, vector<1x8x1xf32>
      %43 = vector.shape_cast %42 : vector<1x8x1xf32> to vector<8x1xf32>
      %c0_31 = arith.constant 0 : index
      %c0_32 = arith.constant 0 : index
      %44 = vector.load %arg11[%c0_31, %c0_32] : memref<1x1xf32, #tpu.memory_space<vmem>>, vector<1x1xf32>
      %c0_33 = arith.constant 0 : index
      %c0_34 = arith.constant 0 : index
      %45 = vector.load %arg9[%c0_33, %c0_34] : memref<8x1xf32, #tpu.memory_space<vmem>>, vector<8x1xf32>
      %46 = arith.mulf %45, %43 : vector<8x1xf32>
      %cst_35 = arith.constant dense<0.000000e+00> : vector<1xf32>
      %47 = vector.multi_reduction <add>, %46, %cst_35 [0] : vector<8x1xf32> to vector<1xf32>
      %48 = vector.shape_cast %47 : vector<1xf32> to vector<1x1xf32>
      %49 = arith.addf %44, %48 : vector<1x1xf32>
      %c0_36 = arith.constant 0 : index
      %c0_37 = arith.constant 0 : index
      %50 = vector.load %arg11[%c0_36, %c0_37] : memref<1x1xf32, #tpu.memory_space<vmem>>, vector<1x1xf32>
      tpu.vector_store %arg11[%c0_36, %c0_37], %49 {strides = array<i32>} : memref<1x1xf32, #tpu.memory_space<vmem>>, vector<1x1xf32>,
      %c0_38 = arith.constant 0 : index
      %c0_39 = arith.constant 0 : index
      %51 = vector.load %arg12[%c0_38, %c0_39] : memref<1x1xf32, #tpu.memory_space<vmem>>, vector<1x1xf32>
      %cst_40 = arith.constant dense<0.000000e+00> : vector<1xf32>
      %52 = vector.multi_reduction <add>, %43, %cst_40 [0] : vector<8x1xf32> to vector<1xf32>
      %53 = vector.shape_cast %52 : vector<1xf32> to vector<1x1xf32>
      %54 = arith.addf %51, %53 : vector<1x1xf32>
      %c0_41 = arith.constant 0 : index
      %c0_42 = arith.constant 0 : index
      %55 = vector.load %arg12[%c0_41, %c0_42] : memref<1x1xf32, #tpu.memory_space<vmem>>, vector<1x1xf32>
      tpu.vector_store %arg12[%c0_41, %c0_42], %54 {strides = array<i32>} : memref<1x1xf32, #tpu.memory_space<vmem>>, vector<1x1xf32>,
    } else {
    }
    %c0_i32_23 = arith.constant 0 : i32
    %34 = arith.cmpi eq, %arg1, %c0_i32_23 : i32
    %35 = arith.extui %34 : i1 to i32
    %c0_i32_24 = arith.constant 0 : i32
    %36 = arith.cmpi ne, %35, %c0_i32_24 : i32
    scf.if %36 {
      %c0_28 = arith.constant 0 : index
      %c0_29 = arith.constant 0 : index
      %c0_30 = arith.constant 0 : index
      %42 = vector.load %arg6[%c0_28, %c0_29, %c0_30] : memref<1x1x16xf32, #tpu.memory_space<vmem>>, vector<1x1x16xf32>
      %43 = vector.shape_cast %42 : vector<1x1x16xf32> to vector<1x16xf32>
      %c0_31 = arith.constant 0 : index
      %c0_32 = arith.constant 0 : index
      %44 = vector.load %arg13[%c0_31, %c0_32] : memref<1x1xf32, #tpu.memory_space<vmem>>, vector<1x1xf32>
      %45 = arith.index_cast %arg2 : i32 to index
      %c0_33 = arith.constant 0 : index
      %c0_34 = arith.constant 0 : index
      %46 = vector.load %arg10[%45, %c0_33, %c0_34] : memref<1x1x16xf32, #tpu.memory_space<vmem>>, vector<1x1x16xf32>
      %47 = vector.shape_cast %46 : vector<1x1x16xf32> to vector<1x16xf32>
      %48 = arith.mulf %47, %43 : vector<1x16xf32>
      %cst_35 = arith.constant dense<0.000000e+00> : vector<1xf32>
      %49 = vector.multi_reduction <add>, %48, %cst_35 [1] : vector<1x16xf32> to vector<1xf32>
      %50 = vector.shape_cast %49 : vector<1xf32> to vector<1x1xf32>
      %51 = arith.addf %44, %50 : vector<1x1xf32>
      %c0_36 = arith.constant 0 : index
      %c0_37 = arith.constant 0 : index
      %52 = vector.load %arg13[%c0_36, %c0_37] : memref<1x1xf32, #tpu.memory_space<vmem>>, vector<1x1xf32>
      tpu.vector_store %arg13[%c0_36, %c0_37], %51 {strides = array<i32>} : memref<1x1xf32, #tpu.memory_space<vmem>>, vector<1x1xf32>,
      %c0_38 = arith.constant 0 : index
      %c0_39 = arith.constant 0 : index
      %53 = vector.load %arg14[%c0_38, %c0_39] : memref<1x1xf32, #tpu.memory_space<vmem>>, vector<1x1xf32>
      %cst_40 = arith.constant dense<0.000000e+00> : vector<1xf32>
      %54 = vector.multi_reduction <add>, %43, %cst_40 [1] : vector<1x16xf32> to vector<1xf32>
      %55 = vector.shape_cast %54 : vector<1xf32> to vector<1x1xf32>
      %56 = arith.addf %53, %55 : vector<1x1xf32>
      %c0_41 = arith.constant 0 : index
      %c0_42 = arith.constant 0 : index
      %57 = vector.load %arg14[%c0_41, %c0_42] : memref<1x1xf32, #tpu.memory_space<vmem>>, vector<1x1xf32>
      tpu.vector_store %arg14[%c0_41, %c0_42], %56 {strides = array<i32>} : memref<1x1xf32, #tpu.memory_space<vmem>>, vector<1x1xf32>,
    } else {
    }
    %c0_i32_25 = arith.constant 0 : i32
    %37 = arith.cmpi eq, %arg1, %c0_i32_25 : i32
    %c0_i32_26 = arith.constant 0 : i32
    %38 = arith.cmpi eq, %arg2, %c0_i32_26 : i32
    %39 = arith.andi %37, %38 : i1
    %40 = arith.extui %39 : i1 to i32
    %c0_i32_27 = arith.constant 0 : i32
    %41 = arith.cmpi ne, %40, %c0_i32_27 : i32
    scf.if %41 {
      %c0_28 = arith.constant 0 : index
      %c0_29 = arith.constant 0 : index
      %42 = vector.load %arg11[%c0_28, %c0_29] : memref<1x1xf32, #tpu.memory_space<vmem>>, vector<1x1xf32>
      %c0_30 = arith.constant 0 : index
      %c0_31 = arith.constant 0 : index
      %43 = vector.load %arg12[%c0_30, %c0_31] : memref<1x1xf32, #tpu.memory_space<vmem>>, vector<1x1xf32>
      %44 = arith.divf %42, %43 : vector<1x1xf32>
      %c0_32 = arith.constant 0 : index
      %c0_33 = arith.constant 0 : index
      %c0_34 = arith.constant 0 : index
      %45 = vector.load %arg7[%c0_32, %c0_33, %c0_34] : memref<1x1x1xf32, #tpu.memory_space<vmem>>, vector<1x1x1xf32>
      %46 = vector.shape_cast %45 : vector<1x1x1xf32> to vector<1x1xf32>
      %47 = vector.shape_cast %44 : vector<1x1xf32> to vector<1x1x1xf32>
      tpu.vector_store %arg7[%c0_32, %c0_33, %c0_34], %47 {strides = array<i32>} : memref<1x1x1xf32, #tpu.memory_space<vmem>>, vector<1x1x1xf32>,
      %c0_35 = arith.constant 0 : index
      %c0_36 = arith.constant 0 : index
      %48 = vector.load %arg13[%c0_35, %c0_36] : memref<1x1xf32, #tpu.memory_space<vmem>>, vector<1x1xf32>
      %c0_37 = arith.constant 0 : index
      %c0_38 = arith.constant 0 : index
      %49 = vector.load %arg14[%c0_37, %c0_38] : memref<1x1xf32, #tpu.memory_space<vmem>>, vector<1x1xf32>
      %50 = arith.divf %48, %49 : vector<1x1xf32>
      %c0_39 = arith.constant 0 : index
      %c0_40 = arith.constant 0 : index
      %c0_41 = arith.constant 0 : index
      %51 = vector.load %arg8[%c0_39, %c0_40, %c0_41] : memref<1x1x1xf32, #tpu.memory_space<vmem>>, vector<1x1x1xf32>
      %52 = vector.shape_cast %51 : vector<1x1x1xf32> to vector<1x1xf32>
      %53 = vector.shape_cast %50 : vector<1x1xf32> to vector<1x1x1xf32>
      tpu.vector_store %arg8[%c0_39, %c0_40, %c0_41], %53 {strides = array<i32>} : memref<1x1x1xf32, #tpu.memory_space<vmem>>, vector<1x1x1xf32>,
    } else {
    }
    return
  }
  func.func @transform_0(%arg0: i32, %arg1: i32, %arg2: i32) -> (i32, i32, i32) {
    %c0_i32 = arith.constant 0 : i32
    %c0_i32_0 = arith.constant 0 : i32
    return %arg0, %arg1, %c0_i32 : i32, i32, i32
  }
  func.func @transform_1(%arg0: i32, %arg1: i32, %arg2: i32) -> (i32, i32, i32) {
    %c0_i32 = arith.constant 0 : i32
    %c0_i32_0 = arith.constant 0 : i32
    return %arg0, %c0_i32, %arg2 : i32, i32, i32
  }
  func.func @transform_2(%arg0: i32, %arg1: i32, %arg2: i32) -> (i32, i32, i32) {
    %c0_i32 = arith.constant 0 : i32
    %c0_i32_0 = arith.constant 0 : i32
    return %arg0, %arg1, %c0_i32 : i32, i32, i32
  }
  func.func @transform_3(%arg0: i32, %arg1: i32, %arg2: i32) -> (i32, i32, i32) {
    %c0_i32 = arith.constant 0 : i32
    %c0_i32_0 = arith.constant 0 : i32
    return %arg0, %c0_i32, %arg2 : i32, i32, i32
  }
  func.func @transform_4(%arg0: i32, %arg1: i32, %arg2: i32) -> (i32, i32, i32) {
    %c0_i32 = arith.constant 0 : i32
    %c0_i32_0 = arith.constant 0 : i32
    %c0_i32_1 = arith.constant 0 : i32
    return %arg0, %c0_i32, %c0_i32_0 : i32, i32, i32
  }
  func.func @transform_5(%arg0: i32, %arg1: i32, %arg2: i32) -> (i32, i32, i32) {
    %c0_i32 = arith.constant 0 : i32
    %c0_i32_0 = arith.constant 0 : i32
    %c0_i32_1 = arith.constant 0 : i32
    return %arg0, %c0_i32, %c0_i32_0 : i32, i32, i32
  }
}

</mosaic_0001>

<llo_original>
// kernel: tpu_custom_call.1
$region0: #{tpu_custom_call.1}
  #allocation0 [shape = 'u32[]', space=smem, size = 0x4, offset = 0x4, fixed_abs, tag = 'smem constant byte address 0x4 - core index']
  #allocation1 [shape = 'u32[144,128]{1,0:T(1,128)}', space=vmem, size = 0x12000, scoped, tag = 'internal scratch']
  #allocation2 [shape = 'f32[8,1]{1,0:T(8,128)}', space=vmem, size = 0x1000, scoped, tag = 'scratch operand']
  #allocation3 [shape = 'f32[1,1,16]{2,1,0:T(1,128)}', space=vmem, size = 0x200, scoped, tag = 'scratch operand']
  #allocation4 [shape = 'f32[1,1]{1,0:T(1,128)}', space=vmem, size = 0x200, scoped, tag = 'scratch operand']
  #allocation5 [shape = 'f32[1,1]{1,0:T(1,128)}', space=vmem, size = 0x200, scoped, tag = 'scratch operand']
  #allocation6 [shape = 'f32[1,1]{1,0:T(1,128)}', space=vmem, size = 0x200, scoped, tag = 'scratch operand']
  #allocation7 [shape = 'f32[1,1]{1,0:T(1,128)}', space=vmem, size = 0x200, scoped, tag = 'scratch operand']
  %s0 = inlined_call_operand.vmem [shape: bf16[2,8,32], index: 0, kind: input, shape index: {}]
  %s1 = inlined_call_operand.vmem [shape: bf16[2,32,16], index: 1, kind: input, shape index: {}]
  %s2 = inlined_call_operand.vmem [shape: f32[2,8,1], index: 2, kind: input, shape index: {}]
  %s3 = inlined_call_operand.vmem [shape: f32[2,1,16], index: 3, kind: input, shape index: {}]
  %s4 = inlined_call_operand.vmem [shape: f32[2,1,1], index: 4, kind: output, shape index: {0}]
  %s5 = inlined_call_operand.vmem [shape: f32[2,1,1], index: 5, kind: output, shape index: {1}]
  %6 = xla_tuple %s4, %s5
  %s7 = sld [smem:[#allocation0]]
  $region81: #{tpu_custom_call.1} parent=0
    _
  %s9 = ssub.s32 1, %s7
  %s10 = scalar_select 0, %s9, %s7
  loop: start=0, step=1, limit=4
  $region2: #{tpu_custom_call.1} parent=0 // loop_pre_header
    _
  $region3: #{tpu_custom_call.1} parent=0 // loop_header
    %s12 = sphi 0, %s16
    %p13 = scmp.ge.s32.totalorder %s12, 4
    %s19 = sphi 0, %s38
    %s20 = sphi 0, %s34
    %s21 = sphi 0, %s30
    %s22 = sphi 0, %s19
    %s23 = sphi 0, %s20
    %s24 = sphi 0, %s21
    %s25 = sphi 0, %s22
    %s26 = sphi 0, %s23
    %s27 = sphi 0, %s24
    %s43 = sphi 0, %s45
    %s46 = sphi 0, %s43
    %s47 = sphi 0, %s46
    %s63 = sphi 0, %s47
    %s71 = sphi 0, %s73
    %s74 = sphi 0, %s71
    %s75 = sphi 0, %s74
    %s91 = sphi 0, %s75
    %s99 = sphi 0, %s101
    %s102 = sphi 0, %s99
    %s103 = sphi 0, %s102
    %s119 = sphi 0, %s103
    %s127 = sphi 0, %s129
    %s130 = sphi 0, %s127
    %s131 = sphi 0, %s130
    %s147 = sphi 0, %s131
    %s153 = sphi 0, %s155
    %s156 = sphi 0, %s153
    %s157 = sphi 0, %s156
    %s173 = sphi 0, %s157
    %s179 = sphi 0, %s181
    %s182 = sphi 0, %s179
    %s183 = sphi 0, %s182
    %s199 = sphi 0, %s183
  $region4: #{tpu_custom_call.1} parent=0 // loop_header_branch
    %15 = sbr.rel (%p13) target = $region8
  $region5: #{tpu_custom_call.1} parent=0 // loop_body
    %s17 = ssub.s32 %s12, 1
    %s18 = ssub.s32 %s12, 2
    %s28 = sadd.s32 1, %s21
    %p29 = scmp.ge.s32.totalorder %s28, 1
    %s30 = scalar_select %p29, 0, %s28
    %s31 = sadd.s32 1, %s20
    %s32 = scalar_select %p29, %s31, %s20
    %p33 = scmp.ge.s32.totalorder %s32, 1
    %s34 = scalar_select %p33, 0, %s32
    %s35 = sadd.s32 1, %s19
    %s36 = scalar_select %p33, %s35, %s19
    %p37 = scmp.ge.s32.totalorder %s36, 2
    %s38 = scalar_select %p37, 0, %s36
    %s39 = ssub.s32 %s19, %s38
    %s40 = ssub.s32 %s20, %s34
    %s41 = sor.u32 %s39, %s40
    %p42 = scmp.eq.s32.totalorder %s41, 0
    %s44 = sadd.s32 %s43, 1
    %s45 = scalar_select %p42, %s43, %s44
    %p48 = pneg %p42
    %p49 = scmp.eq.s32.totalorder %s12, 1
    %p50 = por %p48, %p49
    %p51 = scmp.ne.s32.totalorder %s43, %s46
    %p52 = scmp.eq.s32.totalorder %s12, 0
    %p53 = por %p51, %p52
    %p54 = scmp.ne.s32.totalorder %s43, %s46
    %p55 = scmp.eq.s32.totalorder %s17, 1
    %p56 = por %p54, %p55
    %p57 = scmp.ne.s32.totalorder %s46, %s47
    %p58 = scmp.eq.s32.totalorder %s17, 0
    %p59 = por %p57, %p58
    %p60 = scmp.ne.s32.totalorder %s46, %s47
    %p61 = scmp.eq.s32.totalorder %s18, 1
    %p62 = por %p60, %p61
    %p64 = scmp.ne.s32.totalorder %s47, %s63
    %p65 = scmp.eq.s32.totalorder %s18, 0
    %p66 = por %p64, %p65
    %s67 = ssub.s32 %s19, %s38
    %s68 = ssub.s32 %s21, %s30
    %s69 = sor.u32 %s67, %s68
    %p70 = scmp.eq.s32.totalorder %s69, 0
    %s72 = sadd.s32 %s71, 1
    %s73 = scalar_select %p70, %s71, %s72
    %p76 = pneg %p70
    %p77 = scmp.eq.s32.totalorder %s12, 1
    %p78 = por %p76, %p77
    %p79 = scmp.ne.s32.totalorder %s71, %s74
    %p80 = scmp.eq.s32.totalorder %s12, 0
    %p81 = por %p79, %p80
    %p82 = scmp.ne.s32.totalorder %s71, %s74
    %p83 = scmp.eq.s32.totalorder %s17, 1
    %p84 = por %p82, %p83
    %p85 = scmp.ne.s32.totalorder %s74, %s75
    %p86 = scmp.eq.s32.totalorder %s17, 0
    %p87 = por %p85, %p86
    %p88 = scmp.ne.s32.totalorder %s74, %s75
    %p89 = scmp.eq.s32.totalorder %s18, 1
    %p90 = por %p88, %p89
    %p92 = scmp.ne.s32.totalorder %s75, %s91
    %p93 = scmp.eq.s32.totalorder %s18, 0
    %p94 = por %p92, %p93
    %s95 = ssub.s32 %s19, %s38
    %s96 = ssub.s32 %s20, %s34
    %s97 = sor.u32 %s95, %s96
    %p98 = scmp.eq.s32.totalorder %s97, 0
    %s100 = sadd.s32 %s99, 1
    %s101 = scalar_select %p98, %s99, %s100
    %p104 = pneg %p98
    %p105 = scmp.eq.s32.totalorder %s12, 1
    %p106 = por %p104, %p105
    %p107 = scmp.ne.s32.totalorder %s99, %s102
    %p108 = scmp.eq.s32.totalorder %s12, 0
    %p109 = por %p107, %p108
    %p110 = scmp.ne.s32.totalorder %s99, %s102
    %p111 = scmp.eq.s32.totalorder %s17, 1
    %p112 = por %p110, %p111
    %p113 = scmp.ne.s32.totalorder %s102, %s103
    %p114 = scmp.eq.s32.totalorder %s17, 0
    %p115 = por %p113, %p114
    %p116 = scmp.ne.s32.totalorder %s102, %s103
    %p117 = scmp.eq.s32.totalorder %s18, 1
    %p118 = por %p116, %p117
    %p120 = scmp.ne.s32.totalorder %s103, %s119
    %p121 = scmp.eq.s32.totalorder %s18, 0
    %p122 = por %p120, %p121
    %s123 = ssub.s32 %s19, %s38
    %s124 = ssub.s32 %s21, %s30
    %s125 = sor.u32 %s123, %s124
    %p126 = scmp.eq.s32.totalorder %s125, 0
    %s128 = sadd.s32 %s127, 1
    %s129 = scalar_select %p126, %s127, %s128
    %p132 = pneg %p126
    %p133 = scmp.eq.s32.totalorder %s12, 1
    %p134 = por %p132, %p133
    %p135 = scmp.ne.s32.totalorder %s127, %s130
    %p136 = scmp.eq.s32.totalorder %s12, 0
    %p137 = por %p135, %p136
    %p138 = scmp.ne.s32.totalorder %s127, %s130
    %p139 = scmp.eq.s32.totalorder %s17, 1
    %p140 = por %p138, %p139
    %p141 = scmp.ne.s32.totalorder %s130, %s131
    %p142 = scmp.eq.s32.totalorder %s17, 0
    %p143 = por %p141, %p142
    %p144 = scmp.ne.s32.totalorder %s130, %s131
    %p145 = scmp.eq.s32.totalorder %s18, 1
    %p146 = por %p144, %p145
    %p148 = scmp.ne.s32.totalorder %s131, %s147
    %p149 = scmp.eq.s32.totalorder %s18, 0
    %p150 = por %p148, %p149
    %s151 = ssub.s32 %s19, %s38
    %p152 = scmp.eq.s32.totalorder %s151, 0
    %s154 = sadd.s32 %s153, 1
    %s155 = scalar_select %p152, %s153, %s154
    %p158 = pneg %p152
    %p159 = scmp.eq.s32.totalorder %s12, 1
    %p160 = por %p158, %p159
    %p161 = scmp.ne.s32.totalorder %s153, %s156
    %p162 = scmp.eq.s32.totalorder %s12, 0
    %p163 = por %p161, %p162
    %p164 = scmp.ne.s32.totalorder %s153, %s156
    %p165 = scmp.eq.s32.totalorder %s17, 1
    %p166 = por %p164, %p165
    %p167 = scmp.ne.s32.totalorder %s156, %s157
    %p168 = scmp.eq.s32.totalorder %s17, 0
    %p169 = por %p167, %p168
    %p170 = scmp.ne.s32.totalorder %s156, %s157
    %p171 = scmp.eq.s32.totalorder %s18, 1
    %p172 = por %p170, %p171
    %p174 = scmp.ne.s32.totalorder %s157, %s173
    %p175 = scmp.eq.s32.totalorder %s18, 0
    %p176 = por %p174, %p175
    %s177 = ssub.s32 %s19, %s38
    %p178 = scmp.eq.s32.totalorder %s177, 0
    %s180 = sadd.s32 %s179, 1
    %s181 = scalar_select %p178, %s179, %s180
    %p184 = pneg %p178
    %p185 = scmp.eq.s32.totalorder %s12, 1
    %p186 = por %p184, %p185
    %p187 = scmp.ne.s32.totalorder %s179, %s182
    %p188 = scmp.eq.s32.totalorder %s12, 0
    %p189 = por %p187, %p188
    %p190 = scmp.ne.s32.totalorder %s179, %s182
    %p191 = scmp.eq.s32.totalorder %s17, 1
    %p192 = por %p190, %p191
    %p193 = scmp.ne.s32.totalorder %s182, %s183
    %p194 = scmp.eq.s32.totalorder %s17, 0
    %p195 = por %p193, %p194
    %p196 = scmp.ne.s32.totalorder %s182, %s183
    %p197 = scmp.eq.s32.totalorder %s18, 1
    %p198 = por %p196, %p197
    %p200 = scmp.ne.s32.totalorder %s183, %s199
    %p201 = scmp.eq.s32.totalorder %s18, 0
    %p202 = por %p200, %p201
    %p203 = scmp.le.s32.totalorder 1, %s12
    %p204 = scmp.lt.s32.totalorder %s12, 3
    %p205 = pnand %p203, %p204
    %p206 = pneg %p205
    // Predicated region
    $region9: #{tpu_custom_call.1} parent=5 // pred_check
      _
    $region10: #{tpu_custom_call.1} parent=5 // pred_check_branch
      %208 = sbr.rel (%p205) target = $region12
    $region11: #{tpu_custom_call.1} parent=5 // pred_region
      %s209 = ssub.s32 %s12, 1
    $region12: #{tpu_custom_call.1} parent=5 // pred_fallthru
      _
    %p210 = scmp.lt.s32.totalorder %s12, 2
    // Predicated region
    $region13: #{tpu_custom_call.1} parent=5 // pred_check
      %p211 = pneg %p210
    $region14: #{tpu_custom_call.1} parent=5 // pred_check_branch
      %213 = sbr.rel (%p211) target = $region16
    $region15: #{tpu_custom_call.1} parent=5 // pred_region
      // Predicated region
      $region17: #{tpu_custom_call.1} parent=15 // pred_check
        %p214 = pneg %p53
      $region18: #{tpu_custom_call.1} parent=15 // pred_check_branch
        %216 = sbr.rel (%p214) target = $region20
      $region19: #{tpu_custom_call.1} parent=15 // pred_region
        %p217 = scmp.lt.s32.totalorder %s19, 1
        %s218 = scalar_select %p217, %s19, 1
        %p219 = scmp.lt.s32.totalorder %s20, 0
        %s220 = scalar_select %p219, %s20, 0
        %s221 = sadd.s32 %s220, %s218
        %s222 = smul.addr %s221, 4
        %s223 = scalar_lea.vmem %s0, %s222
      $region20: #{tpu_custom_call.1} parent=15 // pred_fallthru
        _
      // Predicated region
      $region21: #{tpu_custom_call.1} parent=15 // pred_check
        %p224 = pneg %p81
      $region22: #{tpu_custom_call.1} parent=15 // pred_check_branch
        %226 = sbr.rel (%p224) target = $region24
      $region23: #{tpu_custom_call.1} parent=15 // pred_region
        %p227 = scmp.lt.s32.totalorder %s19, 1
        %s228 = scalar_select %p227, %s19, 1
        %p229 = scmp.lt.s32.totalorder %s21, 0
        %s230 = scalar_select %p229, %s21, 0
        %s231 = smul.addr %s228, 4
        %s232 = sadd.s32 %s230, %s231
        %s233 = smul.addr %s232, 4
        %s234 = scalar_lea.vmem %s1, %s233
      $region24: #{tpu_custom_call.1} parent=15 // pred_fallthru
        _
      // Predicated region
      $region25: #{tpu_custom_call.1} parent=15 // pred_check
        %p235 = pneg %p109
      $region26: #{tpu_custom_call.1} parent=15 // pred_check_branch
        %237 = sbr.rel (%p235) target = $region28
      $region27: #{tpu_custom_call.1} parent=15 // pred_region
        %p238 = scmp.lt.s32.totalorder %s19, 1
        %s239 = scalar_select %p238, %s19, 1
        %p240 = scmp.lt.s32.totalorder %s20, 0
        %s241 = scalar_select %p240, %s20, 0
        %s242 = sadd.s32 %s241, %s239
        %s243 = smul.addr %s242, 8
        %s244 = scalar_lea.vmem %s2, %s243
      $region28: #{tpu_custom_call.1} parent=15 // pred_fallthru
        _
      // Predicated region
      $region29: #{tpu_custom_call.1} parent=15 // pred_check
        %p245 = pneg %p137
      $region30: #{tpu_custom_call.1} parent=15 // pred_check_branch
        %247 = sbr.rel (%p245) target = $region32
      $region31: #{tpu_custom_call.1} parent=15 // pred_region
        %p248 = scmp.lt.s32.totalorder %s19, 1
        %s249 = scalar_select %p248, %s19, 1
        %p250 = scmp.lt.s32.totalorder %s21, 0
        %s251 = scalar_select %p250, %s21, 0
        %s252 = sadd.s32 %s251, %s249
        %s253 = scalar_lea.vmem %s3, %s252
      $region32: #{tpu_custom_call.1} parent=15 // pred_fallthru
        _
    $region16: #{tpu_custom_call.1} parent=5 // pred_fallthru
      _
    %p254 = scmp.le.s32.totalorder 1, %s12
    %p255 = scmp.lt.s32.totalorder %s12, 3
    %p256 = pnand %p254, %p255
    %p257 = pneg %p256
    // Predicated region
    $region33: #{tpu_custom_call.1} parent=5 // pred_check
      _
    $region34: #{tpu_custom_call.1} parent=5 // pred_check_branch
      %259 = sbr.rel (%p256) target = $region36
    $region35: #{tpu_custom_call.1} parent=5 // pred_region
      %s260 = ssub.s32 %s12, 1
      %p261 = scmp.lt.s32.totalorder %s22, 1
      %s262 = scalar_select %p261, %s22, 1
      %p263 = scmp.lt.s32.totalorder %s23, 0
      %s264 = scalar_select %p263, %s23, 0
      %s265 = sadd.s32 %s264, %s262
      %s266 = smul.addr %s265, 4
      %s267 = scalar_lea.vmem %s0, %s266
      %p268 = pneg %p59
      %p269 = pneg %p56
      %p270 = scmp.lt.s32.totalorder %s22, 1
      %s271 = scalar_select %p270, %s22, 1
      %p272 = scmp.lt.s32.totalorder %s24, 0
      %s273 = scalar_select %p272, %s24, 0
      %s274 = smul.addr %s271, 4
      %s275 = sadd.s32 %s273, %s274
      %s276 = smul.addr %s275, 4
      %s277 = scalar_lea.vmem %s1, %s276
      %p278 = pneg %p87
      %p279 = pneg %p84
      %p280 = scmp.lt.s32.totalorder %s22, 1
      %s281 = scalar_select %p280, %s22, 1
      %p282 = scmp.lt.s32.totalorder %s23, 0
      %s283 = scalar_select %p282, %s23, 0
      %s284 = sadd.s32 %s283, %s281
      %s285 = smul.addr %s284, 8
      %s286 = scalar_lea.vmem %s2, %s285
      %p287 = pneg %p115
      %p288 = pneg %p112
      %p289 = scmp.lt.s32.totalorder %s22, 1
      %s290 = scalar_select %p289, %s22, 1
      %p291 = scmp.lt.s32.totalorder %s24, 0
      %s292 = scalar_select %p291, %s24, 0
      %s293 = sadd.s32 %s292, %s290
      %s294 = scalar_lea.vmem %s3, %s293
      %p295 = pneg %p143
      %p296 = pneg %p140
      %p297 = pneg %p169
      %p298 = pneg %p166
      %p299 = scmp.lt.s32.totalorder %s22, 1
      %s300 = scalar_select %p299, %s22, 1
      %s301 = scalar_lea.vmem %s4, %s300
      %p302 = pneg %p195
      %p303 = pneg %p192
      %p304 = scmp.lt.s32.totalorder %s22, 1
      %s305 = scalar_select %p304, %s22, 1
      %s306 = scalar_lea.vmem %s5, %s305
      %p307 = scmp.lt.s32.totalorder %s22, 1
      %s308 = scalar_select %p307, %s22, 1
      %p309 = scmp.lt.s32.totalorder %s23, 0
      %s310 = scalar_select %p309, %s23, 0
      %s311 = sadd.s32 %s310, %s308
      %s312 = smul.addr %s311, 4
      %s313 = scalar_lea.vmem %s0, %s312
      %p314 = scmp.lt.s32.totalorder %s22, 1
      %s315 = scalar_select %p314, %s22, 1
      %p316 = scmp.lt.s32.totalorder %s24, 0
      %s317 = scalar_select %p316, %s24, 0
      %s318 = smul.addr %s315, 4
      %s319 = sadd.s32 %s317, %s318
      %s320 = smul.addr %s319, 4
      %s321 = scalar_lea.vmem %s1, %s320
      %p322 = scmp.lt.s32.totalorder %s22, 1
      %s323 = scalar_select %p322, %s22, 1
      %p324 = scmp.lt.s32.totalorder %s23, 0
      %s325 = scalar_select %p324, %s23, 0
      %s326 = sadd.s32 %s325, %s323
      %s327 = smul.addr %s326, 8
      %s328 = scalar_lea.vmem %s2, %s327
      %p329 = scmp.lt.s32.totalorder %s22, 1
      %s330 = scalar_select %p329, %s22, 1
      %p331 = scmp.lt.s32.totalorder %s24, 0
      %s332 = scalar_select %p331, %s24, 0
      %s333 = sadd.s32 %s332, %s330
      %s334 = scalar_lea.vmem %s3, %s333
      %p335 = scmp.lt.s32.totalorder %s22, 1
      %s336 = scalar_select %p335, %s22, 1
      %s337 = scalar_lea.vmem %s4, %s336
      %p338 = scmp.lt.s32.totalorder %s22, 1
      %s339 = scalar_select %p338, %s22, 1
      %s340 = scalar_lea.vmem %s5, %s339
      %p342 = scmp.eq.s32.totalorder %s23, 0
      %p343 = scmp.eq.s32.totalorder %s24, 0
      %p344 = pnand %p342, %p343
      %p345 = pneg %p344
      // Predicated region
      $region37: #{tpu_custom_call.1} parent=35 // pred_check
        _
      $region38: #{tpu_custom_call.1} parent=35 // pred_check_branch
        %347 = sbr.rel (%p344) target = $region40
      $region39: #{tpu_custom_call.1} parent=35 // pred_region
        %vm348 = vcmask 0
        %349 = vst.msk [vmem:[#allocation4] sm:$0x1] %vm348, 0.0
        %350 = vst.msk [vmem:[#allocation5] sm:$0x1] %vm348, 0.0
        %351 = vst.msk [vmem:[#allocation6] sm:$0x1] %vm348, 0.0
        %352 = vst.msk [vmem:[#allocation7] sm:$0x1] %vm348, 0.0
      $region40: #{tpu_custom_call.1} parent=35 // pred_fallthru
        _
      // Predicated region
      $region41: #{tpu_custom_call.1} parent=35 // pred_check
        %p353 = pneg %p343
      $region42: #{tpu_custom_call.1} parent=35 // pred_check_branch
        %355 = sbr.rel (%p353) target = $region44
      $region43: #{tpu_custom_call.1} parent=35 // pred_region
        %vm356 = vcmask 7168
        %357 = vst.msk [vmem:[#allocation2] sm:$0xff] %vm356, -1e+30
      $region44: #{tpu_custom_call.1} parent=35 // pred_fallthru
        _
      // Predicated region
      $region45: #{tpu_custom_call.1} parent=35 // pred_check
        %p358 = pneg %p342
      $region46: #{tpu_custom_call.1} parent=35 // pred_check_branch
        %360 = sbr.rel (%p358) target = $region48
      $region47: #{tpu_custom_call.1} parent=35 // pred_region
        %s361 = scalar_lea.vmem [#allocation3], %s24
        %vm362 = vcmask 122880
        %363 = vst.msk [vmem:[%s361] sm:$0x1] %vm362, -1e+30
      $region48: #{tpu_custom_call.1} parent=35 // pred_fallthru
        _
      %v364 = vld [vmem:[%s313] sm:$0xf]
      %v365 = vld [vmem:[%s321] sm:$0xf]
      %v366 = vld [vmem:[%s321 + $0x4] sm:$0xf]
      %v367 = vld [vmem:[%s321 + $0x8] sm:$0xf]
      %v368 = vld [vmem:[%s321 + $0xc] sm:$0xf]
      %v373 = vunpack.c.l.b16 %v365
      %v374 = vunpack.c.l.b16 %v366
      %v375 = vunpack.c.l.b16 %v367
      %v376 = vunpack.c.l.b16 %v368
      %v377 = vpack.c.b16 %v374, %v373
      %v378 = vpack.c.b16 %v376, %v375
      %vm381 = vcmask 261120
      %v383 = vsel %vm381, %v364, 0
      %385 = vmatprep.subr.bf16.mxu0 0
      %386 = vmatpush1.bf16.msra.mxu0 0
      %387 = vmatprep.subr.bf16.mxu0 0
      %388 = vmatpush1.bf16.msra.mxu0 0
      %389 = vmatprep.subr.bf16.mxu0 0
      %390 = vmatpush1.bf16.msra.mxu0 0
      %391 = vmatprep.subr.bf16.mxu0 0
      %392 = vmatpush1.bf16.msra.mxu0 0
      %393 = vmatprep.subr.bf16.mxu0 0
      %394 = vmatpush1.bf16.msra.mxu0 0
      %395 = vmatprep.subr.bf16.mxu0 0
      %396 = vmatpush1.bf16.msra.mxu0 0
      %397 = vmatprep.subr.bf16.mxu0 0
      %398 = vmatpush1.bf16.msra.mxu0 %v378
      %399 = vmatprep.subr.bf16.mxu0 0
      %400 = vmatpush1.bf16.msra.mxu0 %v377
      %401 = vmatprep.subr.bf16.mxu0 0
      %402 = vmatpush2.bf16.msra.mxu0 0
      %403 = vmatprep.subr.bf16.mxu0 0
      %404 = vmatpush2.bf16.msra.mxu0 0
      %405 = vmatprep.subr.bf16.mxu0 0
      %406 = vmatpush2.bf16.msra.mxu0 0
      %407 = vmatprep.subr.bf16.mxu0 0
      %408 = vmatpush2.bf16.msra.mxu0 0
      %409 = vmatprep.subr.bf16.mxu0 0
      %410 = vmatpush2.bf16.msra.mxu0 0
      %411 = vmatprep.subr.bf16.mxu0 0
      %412 = vmatpush2.bf16.msra.mxu0 0
      %413 = vmatprep.subr.bf16.mxu0 0
      %414 = vmatpush2.bf16.msra.mxu0 0
      %415 = vmatprep.subr.bf16.mxu0 0
      %416 = vmatpush2.bf16.msra.mxu0 0
      %417 = vmatprep.mubr.bf16.mxu0 0
      %418 = vmatmul.mubr.bf16.gmra.mxu0 %v383
      %v419 = vpop.f32.mrf.mxu0
      %v420 = vadd.f32 0.0, %v419
      %v421 = vpop.f32.mrf.mxu0
      %v422 = vpop.f32.mrf.mxu0
      %v423 = vpop.f32.mrf.mxu0
      %424 = vdwg.mxu0
      %v425 = vld [vmem:[#allocation2] sm:$0xff]
      %vm426 = vcmask 130048
      %v427 = vsel %vm426, %v420, -inf
      %428 = vmax.xlane.f32.xlu0 %v427
      %v429 = vpop.xlane.xlu0 %428
      %v430 = vmax.f32 %v425, %v429
      %vm431 = vcmask 7168
      %432 = vst.msk [vmem:[#allocation2] sm:$0xff] %vm431, %v430
      %s433 = scalar_lea.vmem [#allocation3], %s24
      %v434 = vld [vmem:[%s433] sm:$0x1]
      %v435 = vrot.slane %v427, 4
      %v436 = vmax.f32 %v427, %v435
      %v437 = vrot.slane %v436, 2
      %v438 = vmax.f32 %v436, %v437
      %v439 = vrot.slane %v438, 1
      %v440 = vmax.f32 %v438, %v439
      %v441 = vmax.f32 %v434, %v440
      %vm442 = vcmask 122880
      %443 = vst.msk [vmem:[%s433] sm:$0x1] %vm442, %v441
      // Predicated region
      $region49: #{tpu_custom_call.1} parent=35 // pred_check
        %p444 = pneg %p343
      $region50: #{tpu_custom_call.1} parent=35 // pred_check_branch
        %446 = sbr.rel (%p444) target = $region52
      $region51: #{tpu_custom_call.1} parent=35 // pred_region
        %v447 = vld [vmem:[%s328] sm:$0xff]
        %v448 = vld [vmem:[#allocation4] sm:$0x1]
        %v449 = vld [vmem:[#allocation2] sm:$0xff]
        %v450 = vmul.f32 %v449, %v447
        %v451 = vsel %vm431, %v450, 0.0
        %v452 = vrot.slane %v451, 4
        %v453 = vadd.f32 %v451, %v452
        %v454 = vrot.slane %v453, 2
        %v455 = vadd.f32 %v453, %v454
        %v456 = vrot.slane %v455, 1
        %v457 = vadd.f32 %v455, %v456
        %v458 = vadd.f32 %v448, %v457
        %vm459 = vcmask 0
        %460 = vst.msk [vmem:[#allocation4] sm:$0x1] %vm459, %v458
        %v461 = vld [vmem:[#allocation5] sm:$0x1]
        %v462 = vsel %vm431, %v447, 0.0
        %v463 = vrot.slane %v462, 4
        %v464 = vadd.f32 %v462, %v463
        %v465 = vrot.slane %v464, 2
        %v466 = vadd.f32 %v464, %v465
        %v467 = vrot.slane %v466, 1
        %v468 = vadd.f32 %v466, %v467
        %v469 = vadd.f32 %v461, %v468
        %470 = vst.msk [vmem:[#allocation5] sm:$0x1] %vm459, %v469
      $region52: #{tpu_custom_call.1} parent=35 // pred_fallthru
        _
      // Predicated region
      $region53: #{tpu_custom_call.1} parent=35 // pred_check
        %p471 = pneg %p342
      $region54: #{tpu_custom_call.1} parent=35 // pred_check_branch
        %473 = sbr.rel (%p471) target = $region56
      $region55: #{tpu_custom_call.1} parent=35 // pred_region
        %v474 = vld [vmem:[%s334] sm:$0x1]
        %v475 = vld [vmem:[#allocation6] sm:$0x1]
        %v476 = vld [vmem:[%s433] sm:$0x1]
        %v477 = vmul.f32 %v476, %v474
        %v478 = vsel %vm442, %v477, 0.0
        %479 = vadd.xlane.f32.xlu0 %v478
        %v480 = vpop.xlane.xlu0 %479
        %v481 = vadd.f32 %v475, %v480
        %vm482 = vcmask 0
        %483 = vst.msk [vmem:[#allocation6] sm:$0x1] %vm482, %v481
        %v484 = vld [vmem:[#allocation7] sm:$0x1]
        %v485 = vsel %vm442, %v474, 0.0
        %486 = vadd.xlane.f32.xlu0 %v485
        %v487 = vpop.xlane.xlu0 %486
        %v488 = vadd.f32 %v484, %v487
        %489 = vst.msk [vmem:[#allocation7] sm:$0x1] %vm482, %v488
      $region56: #{tpu_custom_call.1} parent=35 // pred_fallthru
        _
      // Predicated region
      $region57: #{tpu_custom_call.1} parent=35 // pred_check
        _
      $region58: #{tpu_custom_call.1} parent=35 // pred_check_branch
        %491 = sbr.rel (%p344) target = $region60
      $region59: #{tpu_custom_call.1} parent=35 // pred_region
        %v492 = vld [vmem:[#allocation4] sm:$0x1]
        %v493 = vld [vmem:[#allocation5] sm:$0x1]
        %v494 = vrcp.pop %v493
        %v495 = vmul.f32 %v492, %v494
        %vm496 = vcmask 0
        %497 = vst.msk [vmem:[%s337] sm:$0x1] %vm496, %v495
        %v498 = vld [vmem:[#allocation6] sm:$0x1]
        %v499 = vld [vmem:[#allocation7] sm:$0x1]
        %v500 = vrcp.pop %v499
        %v501 = vmul.f32 %v498, %v500
        %502 = vst.msk [vmem:[%s340] sm:$0x1] %vm496, %v501
      $region60: #{tpu_custom_call.1} parent=35 // pred_fallthru
        _
      %p503 = scmp.lt.s32.totalorder %s22, 1
      %s504 = scalar_select %p503, %s22, 1
      %s505 = scalar_lea.vmem %s4, %s504
      %p506 = scmp.lt.s32.totalorder %s22, 1
      %s507 = scalar_select %p506, %s22, 1
      %s508 = scalar_lea.vmem %s5, %s507
      // Predicated region
      $region61: #{tpu_custom_call.1} parent=35 // pred_check
        %p509 = pneg %p166
      $region62: #{tpu_custom_call.1} parent=35 // pred_check_branch
        %511 = sbr.rel (%p509) target = $region64
      $region63: #{tpu_custom_call.1} parent=35 // pred_region
        _
      $region64: #{tpu_custom_call.1} parent=35 // pred_fallthru
        _
      // Predicated region
      $region65: #{tpu_custom_call.1} parent=35 // pred_check
        %p512 = pneg %p192
      $region66: #{tpu_custom_call.1} parent=35 // pred_check_branch
        %514 = sbr.rel (%p512) target = $region68
      $region67: #{tpu_custom_call.1} parent=35 // pred_region
        _
      $region68: #{tpu_custom_call.1} parent=35 // pred_fallthru
        _
    $region36: #{tpu_custom_call.1} parent=5 // pred_fallthru
      _
    %p515 = scmp.le.s32.totalorder 2, %s12
    // Predicated region
    $region69: #{tpu_custom_call.1} parent=5 // pred_check
      %p516 = pneg %p515
    $region70: #{tpu_custom_call.1} parent=5 // pred_check_branch
      %518 = sbr.rel (%p516) target = $region72
    $region71: #{tpu_custom_call.1} parent=5 // pred_region
      %s519 = ssub.s32 %s12, 2
      // Predicated region
      $region73: #{tpu_custom_call.1} parent=71 // pred_check
        %p520 = pneg %p172
      $region74: #{tpu_custom_call.1} parent=71 // pred_check_branch
        %522 = sbr.rel (%p520) target = $region76
      $region75: #{tpu_custom_call.1} parent=71 // pred_region
        %p523 = scmp.lt.s32.totalorder %s25, 1
        %s524 = scalar_select %p523, %s25, 1
        %s525 = scalar_lea.vmem %s4, %s524
      $region76: #{tpu_custom_call.1} parent=71 // pred_fallthru
        _
      // Predicated region
      $region77: #{tpu_custom_call.1} parent=71 // pred_check
        %p526 = pneg %p198
      $region78: #{tpu_custom_call.1} parent=71 // pred_check_branch
        %528 = sbr.rel (%p526) target = $region80
      $region79: #{tpu_custom_call.1} parent=71 // pred_region
        %p529 = scmp.lt.s32.totalorder %s25, 1
        %s530 = scalar_select %p529, %s25, 1
        %s531 = scalar_lea.vmem %s5, %s530
      $region80: #{tpu_custom_call.1} parent=71 // pred_fallthru
        _
    $region72: #{tpu_custom_call.1} parent=5 // pred_fallthru
      _
  $region6: #{tpu_custom_call.1} parent=0 // loop_footer
    %s16 = sadd.s32 1, %s12
  $region7: #{tpu_custom_call.1} parent=0 // loop_footer_branch
    %11 = sbr.rel target = $region3
  $region8: #{tpu_custom_call.1} parent=0 // loop_exit
    _

</llo_original>
